<compile_context>
chip_gen: v6e
topology: v6e:2x2x1
jax: 0.10.0
libtpu: 0.0.40
codegen_flags: <defaults>
</compile_context>

<pallas_src>
import functools

import numpy as np
import jax
import jax.numpy as jnp
from jax import lax
from jax.experimental import pallas as pl
from jax.experimental.pallas import tpu as pltpu


# Explicit scoped-VMEM limit: under v7x's 64 MiB physical, above the
# 16 MiB (v5e) / 32 MiB (v6e/v7x) scoped defaults.
_VMEM_LIMIT_BYTES = 48 * 1024 * 1024
# What the streamed / resident blocks of the segment-sum kernel may occupy.
_TILE_BUDGET_BYTES = 32 * 1024 * 1024


def _round_up(x, m):
    return ((x + m - 1) // m) * m


def _choose_tiles(n, f_pad, u_pad):
    """Pick (TN, TF) for the segment-sum kernel from the VMEM budget."""
    # F tile: largest multiple of 128 dividing f_pad, capped at 512. Keeps the
    # resident (u_pad, TF) output block modest and gives v7x a length-(>1)
    # parallel axis once f_pad > 512.
    tf = 128
    for cand in (512, 384, 256, 128):
        if f_pad % cand == 0:
            tf = cand
            break
    # N tile: target 1024-2048 (HBM-roofline sweet spot on v5e/v6e/v7x),
    # balanced across tiles to limit tail padding, >=128 for tiny N.
    n_cap = _round_up(max(n, 1), 128)
    target = min(2048, n_cap)
    num_tiles = -(-n_cap // target)
    tn = _round_up(-(-n_cap // num_tiles), 128)

    def footprint(tn_):
        feats = 2 * tn_ * tf * 2      # double-buffered bf16 feature tile
        labels = 2 * tn_ * 4          # double-buffered int32 label tile
        out = 2 * u_pad * tf * 4      # resident f32 output/accumulator block
        return feats + labels + out

    while tn > 128 and footprint(tn) > _TILE_BUDGET_BYTES:
        tn -= 128
    return tn, tf


# --------------------- kernel 1: streamed segment-sum -----------------------
def _segment_sum_kernel(labels_ref, feats_ref, sums_ref, *, u_pad):
    ni = pl.program_id(1)

    @pl.when(ni == 0)
    def _():
        sums_ref[...] = jnp.zeros_like(sums_ref)

    feats = feats_ref[...]                                   # (TN, TF) bf16
    labels = labels_ref[...]                                 # (1, TN) int32
    tn = feats.shape[0]
    # Rebuilt every step on purpose: VPU filler on a DMA-bound kernel
    # (review item: hoist only if the kernel ever becomes VALU-limited).
    row_ids = lax.broadcasted_iota(jnp.int32, (u_pad, tn), 0)
    onehot = (row_ids == labels).astype(feats.dtype)         # (U_pad, TN) bf16
    # One-hot stays as LHS: (u_pad, TF) accumulator remains lane-dense.
    sums_ref[...] += jnp.dot(onehot, feats,
                             preferred_element_type=jnp.float32)


# --------------------------- kernel 2: epilogue ------------------------------
def _epilogue_kernel(sums_ref, counts_ref, w_ref, o_ref, *, n_unique, u_pad,
                     lambda_reg, normalize_features):
    counts = counts_ref[...]                                 # (U_pad, 1) f32
    avg = sums_ref[...] / (counts + 1e-8)                    # (U_pad, F_pad)

    if normalize_features:
        # F.normalize(p=2, dim=1, eps=1e-12): v / max(||v||, 1e-12)
        sumsq = jnp.sum(avg * avg, axis=1, keepdims=True)
        avg = avg * lax.rsqrt(jnp.maximum(sumsq, 1e-24))

    # W = interaction matrix with the diagonal forced to 1.0
    w_in = w_ref[...]
    r = lax.broadcasted_iota(jnp.int32, (u_pad, u_pad), 0)
    c = lax.broadcasted_iota(jnp.int32, (u_pad, u_pad), 1)
    W = jnp.where(r == c, 1.0, w_in)

    D = jnp.maximum(jnp.sum(W, axis=1, keepdims=True), 0.0)
    d_inv_sqrt = lax.rsqrt(D + 1e-8)

    xtx_trace = jnp.sum(avg * avg)
    x_scaled = avg * d_inv_sqrt
    wx = jnp.dot(W, x_scaled, preferred_element_type=jnp.float32)
    sim_trace = jnp.sum(x_scaled * wx)

    loss = (xtx_trace - sim_trace) / float(n_unique)
    o_ref[0, 0] = lambda_reg * loss


# --------------------- traced/cached pallas_call builder --------------------
@functools.lru_cache(maxsize=None)
def _build_loss_fn(n, f, n_unique, u_pad, f_pad, n_pad, tn, tf,
                   normalize_features, lambda_reg):
    grid = (f_pad // tf, n_pad // tn)

    seg_call = pl.pallas_call(
        functools.partial(_segment_sum_kernel, u_pad=u_pad),
        out_shape=jax.ShapeDtypeStruct((u_pad, f_pad), jnp.float32),
        grid_spec=pltpu.PrefetchScalarGridSpec(
            num_scalar_prefetch=0,
            grid=grid,
            in_specs=[
                pl.BlockSpec((1, tn), lambda fi, ni: (0, ni)),      # labels
                pl.BlockSpec((tn, tf), lambda fi, ni: (ni, fi)),    # features
            ],
            out_specs=pl.BlockSpec((u_pad, tf), lambda fi, ni: (0, fi)),
        ),
        compiler_params=pltpu.CompilerParams(
            dimension_semantics=("parallel", "arbitrary"),
            vmem_limit_bytes=_VMEM_LIMIT_BYTES),
    )

    epi_call = pl.pallas_call(
        functools.partial(_epilogue_kernel, n_unique=n_unique, u_pad=u_pad,
                          lambda_reg=lambda_reg,
                          normalize_features=normalize_features),
        out_shape=jax.ShapeDtypeStruct((1, 1), jnp.float32),
        grid_spec=pltpu.PrefetchScalarGridSpec(
            num_scalar_prefetch=0,
            grid=(1,),
            in_specs=[
                pl.BlockSpec((u_pad, f_pad), lambda i: (0, 0)),     # sums
                pl.BlockSpec((u_pad, 1), lambda i: (0, 0)),         # counts
                pl.BlockSpec((u_pad, u_pad), lambda i: (0, 0)),     # W
            ],
            out_specs=pl.BlockSpec(memory_space=pltpu.MemorySpace.SMEM),
        ),
        compiler_params=pltpu.CompilerParams(
            dimension_semantics=("arbitrary",),
            vmem_limit_bytes=_VMEM_LIMIT_BYTES),
    )

    def run(feats, labels_p, counts, w_p):
        # Device-side cast + pad (no host round trip of the big tensor).
        feats_bf16 = jnp.pad(feats.astype(jnp.bfloat16),
                             ((0, n_pad - n), (0, f_pad - f)))
        sums = seg_call(labels_p, feats_bf16)
        out = epi_call(sums, counts, w_p)
        return out[0, 0]

    return jax.jit(run)


# --------------------------------- wrapper ----------------------------------
def laplacian_regularization_loss(features, interaction_matrix, sirna_labels,
                                  *, normalize_features=True, lambda_reg=1.0):
    """features: (N, F) array (jax or numpy).
    interaction_matrix: (U, U) array already indexed by the sorted unique
      labels (replaces the pandas deduplicate + .loc reindex glue).
    sirna_labels: length-N array/list of label ids (hashable / sortable).
    """
    labels = np.asarray(sirna_labels)
    unique_labels, inverse = np.unique(labels, return_inverse=True)
    n_unique = int(len(unique_labels))

    n, f = int(features.shape[0]), int(features.shape[1])

    w = np.asarray(interaction_matrix, dtype=np.float32)
    assert w.shape == (n_unique, n_unique), (
        "interaction_matrix must be the (U, U) block indexed by the sorted "
        "unique labels")

    u_pad = _round_up(max(n_unique, 1), 8)
    f_pad = _round_up(f, 128)
    tn, tf = _choose_tiles(n, f_pad, u_pad)
    n_pad = _round_up(n, tn)

    labels_p = np.full((1, n_pad), -1, dtype=np.int32)   # -1 => no label row
    labels_p[0, :n] = inverse.astype(np.int32)

    counts = np.bincount(inverse, minlength=u_pad).astype(np.float32)
    counts = counts.reshape(u_pad, 1)

    # Padding of W must stay exactly 0 off-diagonal: the proof that padding
    # leaves the loss unchanged relies on it (zeros by construction here).
    w_p = np.zeros((u_pad, u_pad), dtype=np.float32)
    w_p[:n_unique, :n_unique] = w

    fn = _build_loss_fn(n, f, n_unique, u_pad, f_pad, n_pad, tn, tf,
                        bool(normalize_features), float(lambda_reg))
    return fn(jnp.asarray(features), jnp.asarray(labels_p),
              jnp.asarray(counts), jnp.asarray(w_p))


# ------------------------------ reference -----------------------------------
def _reference_loss(features, interaction_matrix, sirna_labels,
                    normalize_features=True, lambda_reg=1.0):
    """Pure-numpy reference mirroring the PyTorch forward (f32)."""
    labels = np.asarray(sirna_labels)
    _, inverse = np.unique(labels, return_inverse=True)
    n_unique = int(inverse.max()) + 1
    feats = np.asarray(features, dtype=np.float32)
    onehot = np.eye(n_unique, dtype=np.float32)[inverse]          # (N, U)
    counts = onehot.sum(0)[:, None]                               # (U, 1)
    avg = (onehot.T @ feats) / (counts + 1e-8)
    if normalize_features:
        nrm = np.sqrt((avg * avg).sum(1, keepdims=True))
        avg = avg / np.maximum(nrm, 1e-12)
    W = np.asarray(interaction_matrix, dtype=np.float32).copy()
    np.fill_diagonal(W, 1.0)
    D = np.clip(W.sum(1), 0.0, None)
    d_inv_sqrt = 1.0 / np.sqrt(D + 1e-8)
    xtx = (avg * avg).sum()
    xs = avg * d_inv_sqrt[:, None]
    sim = (xs * (W @ xs)).sum()
    return lambda_reg * (xtx - sim) / n_unique


if __name__ == "__main__":
    key = jax.random.PRNGKey(0)
    k1, k2 = jax.random.split(key)

    N, F_DIM, U = 320, 48, 6       # 320 samples, 48-dim features, 6 unique sirnas
    features = jax.random.normal(k1, (N, F_DIM), dtype=jnp.float32)
    # string labels with repeats -> exercises the np.unique host glue
    sirna_labels = np.array([f"sirna_{i % U}" for i in range(N)])

    # Synthetic symmetric interaction matrix for the 6 unique sirnas
    # (stands in for the deduplicated / reindexed pandas DataFrame).
    raw = jax.random.uniform(k2, (U, U), dtype=jnp.float32)
    interaction_matrix = 0.5 * (raw + raw.T)

    loss = laplacian_regularization_loss(
        features, interaction_matrix, sirna_labels,
        normalize_features=True, lambda_reg=1.0)
    loss = jax.block_until_ready(loss)

    # Reference uses the same bf16-rounded features the kernel feeds the MXU,
    # isolating kernel math from the (intentional) bf16 input quantization.
    feats_bf16 = np.asarray(
        jnp.asarray(features, jnp.bfloat16).astype(jnp.float32))
    ref = _reference_loss(feats_bf16, np.asarray(interaction_matrix),
                          sirna_labels, normalize_features=True,
                          lambda_reg=1.0)
    np.testing.assert_allclose(np.asarray(loss), ref, rtol=1e-3, atol=1e-4)

    print("KERNEL_OK")
</pallas_src>

<mosaic_0001>
module attributes {stable_mosaic.version = 11 : i64} {
  func.func @_segment_sum_kernel(%arg0: i32, %arg1: i32, %arg2: memref<1x384xi32, #tpu.memory_space<vmem>>, %arg3: memref<384x128xbf16, #tpu.memory_space<vmem>>, %arg4: memref<8x128xf32, #tpu.memory_space<vmem>>) attributes {dimension_semantics = [#tpu.dimension_semantics<parallel>, #tpu.dimension_semantics<arbitrary>], iteration_bounds = array<i64: 1, 1>, scalar_prefetch = 0 : i64, scratch_operands = 0 : i64, tpu.core_type = #tpu.core_type<tc>, window_params = [{transform_indices = @transform_0, window_bounds = array<i64: 1, 384>}, {transform_indices = @transform_1, window_bounds = array<i64: 384, 128>}, {transform_indices = @transform_2, window_bounds = array<i64: 8, 128>}]} {
    %c0_i32 = arith.constant 0 : i32
    %0 = arith.cmpi eq, %arg1, %c0_i32 : i32
    %1 = arith.extui %0 : i1 to i32
    %c0_i32_0 = arith.constant 0 : i32
    %2 = arith.cmpi ne, %1, %c0_i32_0 : i32
    scf.if %2 {
      %cst_8 = arith.constant 0.000000e+00 : f32
      %15 = vector.broadcast %cst_8 : f32 to vector<8x128xf32>
      %c0_9 = arith.constant 0 : index
      %c0_10 = arith.constant 0 : index
      %16 = vector.load %arg4[%c0_9, %c0_10] : memref<8x128xf32, #tpu.memory_space<vmem>>, vector<8x128xf32>
      tpu.vector_store %arg4[%c0_9, %c0_10], %15 {strides = array<i32>} : memref<8x128xf32, #tpu.memory_space<vmem>>, vector<8x128xf32>,
    } else {
    }
    %c0 = arith.constant 0 : index
    %c0_1 = arith.constant 0 : index
    %3 = vector.load %arg3[%c0, %c0_1] : memref<384x128xbf16, #tpu.memory_space<vmem>>, vector<384x128xbf16>
    %c0_2 = arith.constant 0 : index
    %c0_3 = arith.constant 0 : index
    %4 = vector.load %arg2[%c0_2, %c0_3] : memref<1x384xi32, #tpu.memory_space<vmem>>, vector<1x384xi32>
    %5 = tpu.iota {dimensions = array<i32: 0>} : vector<8x384xi32>
    %6 = vector.broadcast %4 : vector<1x384xi32> to vector<8x384xi32>
    %7 = arith.cmpi eq, %5, %6 : vector<8x384xi32>
    %8 = arith.extui %7 : vector<8x384xi1> to vector<8x384xi32>
    %9 = arith.sitofp %8 : vector<8x384xi32> to vector<8x384xf32>
    %10 = arith.truncf %9 : vector<8x384xf32> to vector<8x384xbf16>
    %c0_4 = arith.constant 0 : index
    %c0_5 = arith.constant 0 : index
    %11 = vector.load %arg4[%c0_4, %c0_5] : memref<8x128xf32, #tpu.memory_space<vmem>>, vector<8x128xf32>
    %cst = arith.constant dense<0.000000e+00> : vector<8x128xf32>
    %12 = tpu.matmul %10, %3, %cst {dimension_numbers = #tpu.dot_dimension_numbers<[1], [0], [0], [1], [0, 0, 1, 1], [], []>} : vector<8x384xbf16>, vector<384x128xbf16>, vector<8x128xf32> -> vector<8x128xf32>
    %13 = arith.addf %11, %12 : vector<8x128xf32>
    %c0_6 = arith.constant 0 : index
    %c0_7 = arith.constant 0 : index
    %14 = vector.load %arg4[%c0_6, %c0_7] : memref<8x128xf32, #tpu.memory_space<vmem>>, vector<8x128xf32>
    tpu.vector_store %arg4[%c0_6, %c0_7], %13 {strides = array<i32>} : memref<8x128xf32, #tpu.memory_space<vmem>>, vector<8x128xf32>,
    return
  }
  func.func @transform_0(%arg0: i32, %arg1: i32) -> (i32, i32) {
    %c0_i32 = arith.constant 0 : i32
    %c0_i32_0 = arith.constant 0 : i32
    return %c0_i32, %arg1 : i32, i32
  }
  func.func @transform_1(%arg0: i32, %arg1: i32) -> (i32, i32) {
    %c0_i32 = arith.constant 0 : i32
    return %arg1, %arg0 : i32, i32
  }
  func.func @transform_2(%arg0: i32, %arg1: i32) -> (i32, i32) {
    %c0_i32 = arith.constant 0 : i32
    %c0_i32_0 = arith.constant 0 : i32
    return %c0_i32, %arg0 : i32, i32
  }
}

module attributes {stable_mosaic.version = 11 : i64} {
  func.func @_epilogue_kernel(%arg0: i32, %arg1: memref<8x128xf32, #tpu.memory_space<vmem>>, %arg2: memref<8x1xf32, #tpu.memory_space<vmem>>, %arg3: memref<8x8xf32, #tpu.memory_space<vmem>>, %arg4: memref<1x1xf32, #tpu.memory_space<smem>>) attributes {dimension_semantics = [#tpu.dimension_semantics<arbitrary>], iteration_bounds = array<i64: 1>, scalar_prefetch = 0 : i64, scratch_operands = 0 : i64, tpu.core_type = #tpu.core_type<tc>, window_params = [{pipeline_mode = #tpu.pipeline_mode<synchronous>, transform_indices = @transform_0, window_bounds = array<i64: 8, 128>}, {pipeline_mode = #tpu.pipeline_mode<synchronous>, transform_indices = @transform_1, window_bounds = array<i64: 8, 1>}, {pipeline_mode = #tpu.pipeline_mode<synchronous>, transform_indices = @transform_2, window_bounds = array<i64: 8, 8>}, {transform_indices = @transform_3, window_bounds = array<i64: 1, 1>}]} {
    %c0 = arith.constant 0 : index
    %c0_0 = arith.constant 0 : index
    %0 = vector.load %arg2[%c0, %c0_0] : memref<8x1xf32, #tpu.memory_space<vmem>>, vector<8x1xf32>
    %c0_1 = arith.constant 0 : index
    %c0_2 = arith.constant 0 : index
    %1 = vector.load %arg1[%c0_1, %c0_2] : memref<8x128xf32, #tpu.memory_space<vmem>>, vector<8x128xf32>
    %cst = arith.constant 9.99999993E-9 : f32
    %2 = vector.broadcast %cst : f32 to vector<8x1xf32>
    %3 = arith.addf %0, %2 : vector<8x1xf32>
    %4 = vector.broadcast %3 : vector<8x1xf32> to vector<8x128xf32>
    %5 = arith.divf %1, %4 : vector<8x128xf32>
    %6 = arith.mulf %5, %5 : vector<8x128xf32>
    %cst_3 = arith.constant dense<0.000000e+00> : vector<8xf32>
    %7 = vector.multi_reduction <add>, %6, %cst_3 [1] : vector<8x128xf32> to vector<8xf32>
    %8 = vector.shape_cast %7 : vector<8xf32> to vector<8x1xf32>
    %cst_4 = arith.constant 1.000000e-24 : f32
    %9 = vector.broadcast %cst_4 : f32 to vector<8x1xf32>
    %10 = arith.maximumf %8, %9 : vector<8x1xf32>
    %11 = math.rsqrt %10 : vector<8x1xf32>
    %12 = vector.broadcast %11 : vector<8x1xf32> to vector<8x128xf32>
    %13 = arith.mulf %5, %12 : vector<8x128xf32>
    %c0_5 = arith.constant 0 : index
    %c0_6 = arith.constant 0 : index
    %14 = vector.load %arg3[%c0_5, %c0_6] : memref<8x8xf32, #tpu.memory_space<vmem>>, vector<8x8xf32>
    %15 = tpu.iota {dimensions = array<i32: 0>} : vector<8x8xi32>
    %16 = tpu.iota {dimensions = array<i32: 1>} : vector<8x8xi32>
    %17 = arith.cmpi eq, %15, %16 : vector<8x8xi32>
    %cst_7 = arith.constant 1.000000e+00 : f32
    %18 = vector.broadcast %cst_7 : f32 to vector<8x8xf32>
    %19 = arith.select %17, %18, %14 : vector<8x8xi1>, vector<8x8xf32>
    %cst_8 = arith.constant dense<0.000000e+00> : vector<8xf32>
    %20 = vector.multi_reduction <add>, %19, %cst_8 [1] : vector<8x8xf32> to vector<8xf32>
    %21 = vector.shape_cast %20 : vector<8xf32> to vector<8x1xf32>
    %cst_9 = arith.constant 0.000000e+00 : f32
    %22 = vector.broadcast %cst_9 : f32 to vector<8x1xf32>
    %23 = arith.maximumf %21, %22 : vector<8x1xf32>
    %cst_10 = arith.constant 9.99999993E-9 : f32
    %24 = vector.broadcast %cst_10 : f32 to vector<8x1xf32>
    %25 = arith.addf %23, %24 : vector<8x1xf32>
    %26 = math.rsqrt %25 : vector<8x1xf32>
    %27 = arith.mulf %13, %13 : vector<8x128xf32>
    %28 = vector.shape_cast %27 : vector<8x128xf32> to vector<1x8x128xf32>
    %cst_11 = arith.constant dense<0.000000e+00> : vector<1xf32>
    %29 = vector.multi_reduction <add>, %28, %cst_11 [1, 2] : vector<1x8x128xf32> to vector<1xf32>
    %30 = vector.shape_cast %29 : vector<1xf32> to vector<1x1x1xf32>
    %31 = vector.extract %30[0, 0, 0] : f32 from vector<1x1x1xf32>
    %32 = vector.broadcast %26 : vector<8x1xf32> to vector<8x128xf32>
    %33 = arith.mulf %13, %32 : vector<8x128xf32>
    %cst_12 = arith.constant dense<0.000000e+00> : vector<8x128xf32>
    %34 = tpu.matmul %19, %33, %cst_12 {dimension_numbers = #tpu.dot_dimension_numbers<[1], [0], [0], [1], [0, 0, 1, 1], [], []>} : vector<8x8xf32>, vector<8x128xf32>, vector<8x128xf32> -> vector<8x128xf32>
    %35 = arith.mulf %33, %34 : vector<8x128xf32>
    %36 = vector.shape_cast %35 : vector<8x128xf32> to vector<1x8x128xf32>
    %cst_13 = arith.constant dense<0.000000e+00> : vector<1xf32>
    %37 = vector.multi_reduction <add>, %36, %cst_13 [1, 2] : vector<1x8x128xf32> to vector<1xf32>
    %38 = vector.shape_cast %37 : vector<1xf32> to vector<1x1x1xf32>
    %39 = vector.extract %38[0, 0, 0] : f32 from vector<1x1x1xf32>
    %40 = arith.subf %31, %39 : f32
    %cst_14 = arith.constant 6.000000e+00 : f32
    %41 = arith.divf %40, %cst_14 : f32
    %cst_15 = arith.constant 1.000000e+00 : f32
    %42 = arith.mulf %cst_15, %41 : f32
    %c0_16 = arith.constant 0 : index
    %c0_17 = arith.constant 0 : index
    %43 = memref.load %arg4[%c0_16, %c0_17] : memref<1x1xf32, #tpu.memory_space<smem>>
    memref.store %42, %arg4[%c0_16, %c0_17] : memref<1x1xf32, #tpu.memory_space<smem>>
    return
  }
  func.func @transform_0(%arg0: i32) -> (i32, i32) {
    %c0_i32 = arith.constant 0 : i32
    %c0_i32_0 = arith.constant 0 : i32
    %c0_i32_1 = arith.constant 0 : i32
    return %c0_i32, %c0_i32_0 : i32, i32
  }
  func.func @transform_1(%arg0: i32) -> (i32, i32) {
    %c0_i32 = arith.constant 0 : i32
    %c0_i32_0 = arith.constant 0 : i32
    %c0_i32_1 = arith.constant 0 : i32
    return %c0_i32, %c0_i32_0 : i32, i32
  }
  func.func @transform_2(%arg0: i32) -> (i32, i32) {
    %c0_i32 = arith.constant 0 : i32
    %c0_i32_0 = arith.constant 0 : i32
    %c0_i32_1 = arith.constant 0 : i32
    return %c0_i32, %c0_i32_0 : i32, i32
  }
  func.func @transform_3(%arg0: i32) -> (i32, i32) {
    %c0_i32 = arith.constant 0 : i32
    %c0_i32_0 = arith.constant 0 : i32
    %c0_i32_1 = arith.constant 0 : i32
    return %c0_i32, %c0_i32_0 : i32, i32
  }
}

</mosaic_0001>

<llo_original>
// kernel: run.2
$region0: #{run.2}
  #allocation0 [shape = 'u32[]', space=smem, size = 0x4, offset = 0x4, fixed_abs, tag = 'smem constant byte address 0x4 - core index']
  #allocation1 [shape = 'u32[144,128]{1,0:T(1,128)}', space=vmem, size = 0x12000, scoped, tag = 'internal scratch']
  %s0 = inlined_call_operand.vmem [shape: s32[1,384], index: 0, kind: input, shape index: {}]
  %s1 = inlined_call_operand.vmem [shape: bf16[384,128], index: 1, kind: input, shape index: {}]
  %s2 = inlined_call_operand.vmem [shape: f32[8,128], index: 2, kind: output, shape index: {}]
  %s3 = sld [smem:[#allocation0]]
  $region22: #{run.2} parent=0
    _
  %s5 = ssub.s32 1, %s3
  %s6 = scalar_select 0, %s5, %s3
  // Predicated region
  $region2: #{run.2} parent=0 // pred_check
    _
  $region3: #{run.2} parent=0 // pred_check_branch
    %8 = sbr.rel (0) target = $region5
  $region4: #{run.2} parent=0 // pred_region
    _
  $region5: #{run.2} parent=0 // pred_fallthru
    _
  // Predicated region
  $region6: #{run.2} parent=0 // pred_check
    _
  $region7: #{run.2} parent=0 // pred_check_branch
    %10 = sbr.rel (0) target = $region9
  $region8: #{run.2} parent=0 // pred_region
    _
  $region9: #{run.2} parent=0 // pred_fallthru
    _
  %p12 = scmp.eq.s32.totalorder 0, 0
  // Predicated region
  $region10: #{run.2} parent=0 // pred_check
    %p13 = pneg %p12
  $region11: #{run.2} parent=0 // pred_check_branch
    %15 = sbr.rel (%p13) target = $region13
  $region12: #{run.2} parent=0 // pred_region
    %16 = vst [vmem:[%s2] sm:$0xff] 0.0
  $region13: #{run.2} parent=0 // pred_fallthru
    _
  %v17 = vld [vmem:[%s1] sm:$0xf]
  %v18 = vld [vmem:[%s1 + $0x4] sm:$0xf]
  %v19 = vld [vmem:[%s1 + $0x8] sm:$0xf]
  %v20 = vld [vmem:[%s1 + $0xc] sm:$0xf]
  %v21 = vld [vmem:[%s1 + $0x10] sm:$0xf]
  %v22 = vld [vmem:[%s1 + $0x14] sm:$0xf]
  %v23 = vld [vmem:[%s1 + $0x18] sm:$0xf]
  %v24 = vld [vmem:[%s1 + $0x1c] sm:$0xf]
  %v25 = vld [vmem:[%s1 + $0x20] sm:$0xf]
  %v26 = vld [vmem:[%s1 + $0x24] sm:$0xf]
  %v27 = vld [vmem:[%s1 + $0x28] sm:$0xf]
  %v28 = vld [vmem:[%s1 + $0x2c] sm:$0xf]
  %v29 = vld [vmem:[%s1 + $0x30] sm:$0xf]
  %v30 = vld [vmem:[%s1 + $0x34] sm:$0xf]
  %v31 = vld [vmem:[%s1 + $0x38] sm:$0xf]
  %v32 = vld [vmem:[%s1 + $0x3c] sm:$0xf]
  %v33 = vld [vmem:[%s1 + $0x40] sm:$0xf]
  %v34 = vld [vmem:[%s1 + $0x44] sm:$0xf]
  %v35 = vld [vmem:[%s1 + $0x48] sm:$0xf]
  %v36 = vld [vmem:[%s1 + $0x4c] sm:$0xf]
  %v37 = vld [vmem:[%s1 + $0x50] sm:$0xf]
  %v38 = vld [vmem:[%s1 + $0x54] sm:$0xf]
  %v39 = vld [vmem:[%s1 + $0x58] sm:$0xf]
  %v40 = vld [vmem:[%s1 + $0x5c] sm:$0xf]
  %v41 = vld [vmem:[%s1 + $0x60] sm:$0xf]
  %v42 = vld [vmem:[%s1 + $0x64] sm:$0xf]
  %v43 = vld [vmem:[%s1 + $0x68] sm:$0xf]
  %v44 = vld [vmem:[%s1 + $0x6c] sm:$0xf]
  %v45 = vld [vmem:[%s1 + $0x70] sm:$0xf]
  %v46 = vld [vmem:[%s1 + $0x74] sm:$0xf]
  %v47 = vld [vmem:[%s1 + $0x78] sm:$0xf]
  %v48 = vld [vmem:[%s1 + $0x7c] sm:$0xf]
  %v49 = vld [vmem:[%s1 + $0x80] sm:$0xf]
  %v50 = vld [vmem:[%s1 + $0x84] sm:$0xf]
  %v51 = vld [vmem:[%s1 + $0x88] sm:$0xf]
  %v52 = vld [vmem:[%s1 + $0x8c] sm:$0xf]
  %v53 = vld [vmem:[%s1 + $0x90] sm:$0xf]
  %v54 = vld [vmem:[%s1 + $0x94] sm:$0xf]
  %v55 = vld [vmem:[%s1 + $0x98] sm:$0xf]
  %v56 = vld [vmem:[%s1 + $0x9c] sm:$0xf]
  %v57 = vld [vmem:[%s1 + $0xa0] sm:$0xf]
  %v58 = vld [vmem:[%s1 + $0xa4] sm:$0xf]
  %v59 = vld [vmem:[%s1 + $0xa8] sm:$0xf]
  %v60 = vld [vmem:[%s1 + $0xac] sm:$0xf]
  %v61 = vld [vmem:[%s1 + $0xb0] sm:$0xf]
  %v62 = vld [vmem:[%s1 + $0xb4] sm:$0xf]
  %v63 = vld [vmem:[%s1 + $0xb8] sm:$0xf]
  %v64 = vld [vmem:[%s1 + $0xbc] sm:$0xf]
  %v65 = vld [vmem:[%s0] sm:$0x7]
  %v66 = vlaneseq
  %v67 = vshrl.u32 %v66, 7
  %v68 = vlaneseq
  %v69 = vshrl.u32 %v68, 7
  %v70 = vsub.s32 0, %v69
  %v71 = vrot.slane %v65, %v70
  %v72 = vlaneseq
  %v73 = vshrl.u32 %v72, 7
  %v74 = vsub.s32 1, %v73
  %v75 = vrot.slane %v65, %v74
  %v76 = vlaneseq
  %v77 = vshrl.u32 %v76, 7
  %v78 = vsub.s32 2, %v77
  %v79 = vrot.slane %v65, %v78
  %vm80 = vcmp.eq.s32.totalorder %v67, %v71
  %vm81 = vcmp.eq.s32.totalorder %v67, %v75
  %vm82 = vcmp.eq.s32.totalorder %v67, %v79
  %v83 = vsel %vm80, 1, 0
  %v84 = vsel %vm81, 1, 0
  %v85 = vsel %vm82, 1, 0
  %v86 = vcvt.s32.f32 %v83
  %v87 = vcvt.s32.f32 %v84
  %v88 = vcvt.s32.f32 %v85
  %v89 = vpack.c.bf16 %v86, %v86
  %v90 = vpack.c.bf16 %v87, %v87
  %v91 = vpack.c.bf16 %v88, %v88
  %v92 = vld [vmem:[%s2] sm:$0xff]
  %v141 = vunpack.c.l.b16 %v17
  %v142 = vunpack.c.l.b16 %v18
  %v143 = vunpack.c.l.b16 %v19
  %v144 = vunpack.c.l.b16 %v20
  %v145 = vunpack.c.l.b16 %v21
  %v146 = vunpack.c.l.b16 %v22
  %v147 = vunpack.c.l.b16 %v23
  %v148 = vunpack.c.l.b16 %v24
  %v149 = vunpack.c.l.b16 %v25
  %v150 = vunpack.c.l.b16 %v26
  %v151 = vunpack.c.l.b16 %v27
  %v152 = vunpack.c.l.b16 %v28
  %v153 = vunpack.c.l.b16 %v29
  %v154 = vunpack.c.l.b16 %v30
  %v155 = vunpack.c.l.b16 %v31
  %v156 = vunpack.c.l.b16 %v32
  %v157 = vunpack.c.l.b16 %v33
  %v158 = vunpack.c.l.b16 %v34
  %v159 = vunpack.c.l.b16 %v35
  %v160 = vunpack.c.l.b16 %v36
  %v161 = vunpack.c.l.b16 %v37
  %v162 = vunpack.c.l.b16 %v38
  %v163 = vunpack.c.l.b16 %v39
  %v164 = vunpack.c.l.b16 %v40
  %v165 = vunpack.c.l.b16 %v41
  %v166 = vunpack.c.l.b16 %v42
  %v167 = vunpack.c.l.b16 %v43
  %v168 = vunpack.c.l.b16 %v44
  %v169 = vunpack.c.l.b16 %v45
  %v170 = vunpack.c.l.b16 %v46
  %v171 = vunpack.c.l.b16 %v47
  %v172 = vunpack.c.l.b16 %v48
  %v173 = vunpack.c.l.b16 %v49
  %v174 = vunpack.c.l.b16 %v50
  %v175 = vunpack.c.l.b16 %v51
  %v176 = vunpack.c.l.b16 %v52
  %v177 = vunpack.c.l.b16 %v53
  %v178 = vunpack.c.l.b16 %v54
  %v179 = vunpack.c.l.b16 %v55
  %v180 = vunpack.c.l.b16 %v56
  %v181 = vunpack.c.l.b16 %v57
  %v182 = vunpack.c.l.b16 %v58
  %v183 = vunpack.c.l.b16 %v59
  %v184 = vunpack.c.l.b16 %v60
  %v185 = vunpack.c.l.b16 %v61
  %v186 = vunpack.c.l.b16 %v62
  %v187 = vunpack.c.l.b16 %v63
  %v188 = vunpack.c.l.b16 %v64
  %v189 = vpack.c.b16 %v142, %v141
  %v190 = vpack.c.b16 %v144, %v143
  %v191 = vpack.c.b16 %v146, %v145
  %v192 = vpack.c.b16 %v148, %v147
  %v193 = vpack.c.b16 %v150, %v149
  %v194 = vpack.c.b16 %v152, %v151
  %v195 = vpack.c.b16 %v154, %v153
  %v196 = vpack.c.b16 %v156, %v155
  %v197 = vpack.c.b16 %v158, %v157
  %v198 = vpack.c.b16 %v160, %v159
  %v199 = vpack.c.b16 %v162, %v161
  %v200 = vpack.c.b16 %v164, %v163
  %v201 = vpack.c.b16 %v166, %v165
  %v202 = vpack.c.b16 %v168, %v167
  %v203 = vpack.c.b16 %v170, %v169
  %v204 = vpack.c.b16 %v172, %v171
  %v205 = vpack.c.b16 %v174, %v173
  %v206 = vpack.c.b16 %v176, %v175
  %v207 = vpack.c.b16 %v178, %v177
  %v208 = vpack.c.b16 %v180, %v179
  %v209 = vpack.c.b16 %v182, %v181
  %v210 = vpack.c.b16 %v184, %v183
  %v211 = vpack.c.b16 %v186, %v185
  %v212 = vpack.c.b16 %v188, %v187
  %237 = vmatprep.subr.bf16.mxu0 0
  %238 = vmatpush1.bf16.msra.mxu0 %v196
  %239 = vmatprep.subr.bf16.mxu0 0
  %240 = vmatpush1.bf16.msra.mxu0 %v195
  %241 = vmatprep.subr.bf16.mxu0 0
  %242 = vmatpush1.bf16.msra.mxu0 %v194
  %243 = vmatprep.subr.bf16.mxu0 0
  %244 = vmatpush1.bf16.msra.mxu0 %v193
  %245 = vmatprep.subr.bf16.mxu0 0
  %246 = vmatpush1.bf16.msra.mxu0 %v192
  %247 = vmatprep.subr.bf16.mxu0 0
  %248 = vmatpush1.bf16.msra.mxu0 %v191
  %249 = vmatprep.subr.bf16.mxu0 0
  %250 = vmatpush1.bf16.msra.mxu0 %v190
  %251 = vmatprep.subr.bf16.mxu0 0
  %252 = vmatpush1.bf16.msra.mxu0 %v189
  %253 = vmatprep.subr.bf16.mxu0 0
  %254 = vmatpush2.bf16.msra.mxu0 %v204
  %255 = vmatprep.subr.bf16.mxu0 0
  %256 = vmatpush2.bf16.msra.mxu0 %v203
  %257 = vmatprep.subr.bf16.mxu0 0
  %258 = vmatpush2.bf16.msra.mxu0 %v202
  %259 = vmatprep.subr.bf16.mxu0 0
  %260 = vmatpush2.bf16.msra.mxu0 %v201
  %261 = vmatprep.subr.bf16.mxu0 0
  %262 = vmatpush2.bf16.msra.mxu0 %v200
  %263 = vmatprep.subr.bf16.mxu0 0
  %264 = vmatpush2.bf16.msra.mxu0 %v199
  %265 = vmatprep.subr.bf16.mxu0 0
  %266 = vmatpush2.bf16.msra.mxu0 %v198
  %267 = vmatprep.subr.bf16.mxu0 0
  %268 = vmatpush2.bf16.msra.mxu0 %v197
  %269 = vmatprep.mubr.bf16.mxu0 %v90
  %270 = vmatmul.mubr.bf16.gmra.mxu0 %v89
  %v271 = vpop.f32.mrf.mxu0
  %v272 = vadd.f32 0.0, %v271
  %v273 = vpop.f32.mrf.mxu0
  %v274 = vpop.f32.mrf.mxu0
  %v275 = vpop.f32.mrf.mxu0
  %276 = vdwg.mxu0
  %277 = vmatprep.subr.bf16.mxu0 0
  %278 = vmatpush1.bf16.msra.mxu0 %v212
  %279 = vmatprep.subr.bf16.mxu0 0
  %280 = vmatpush1.bf16.msra.mxu0 %v211
  %281 = vmatprep.subr.bf16.mxu0 0
  %282 = vmatpush1.bf16.msra.mxu0 %v210
  %283 = vmatprep.subr.bf16.mxu0 0
  %284 = vmatpush1.bf16.msra.mxu0 %v209
  %285 = vmatprep.subr.bf16.mxu0 0
  %286 = vmatpush1.bf16.msra.mxu0 %v208
  %287 = vmatprep.subr.bf16.mxu0 0
  %288 = vmatpush1.bf16.msra.mxu0 %v207
  %289 = vmatprep.subr.bf16.mxu0 0
  %290 = vmatpush1.bf16.msra.mxu0 %v206
  %291 = vmatprep.subr.bf16.mxu0 0
  %292 = vmatpush1.bf16.msra.mxu0 %v205
  %293 = vmatprep.subr.bf16.mxu0 0
  %294 = vmatpush2.bf16.msra.mxu0 0
  %295 = vmatprep.subr.bf16.mxu0 0
  %296 = vmatpush2.bf16.msra.mxu0 0
  %297 = vmatprep.subr.bf16.mxu0 0
  %298 = vmatpush2.bf16.msra.mxu0 0
  %299 = vmatprep.subr.bf16.mxu0 0
  %300 = vmatpush2.bf16.msra.mxu0 0
  %301 = vmatprep.subr.bf16.mxu0 0
  %302 = vmatpush2.bf16.msra.mxu0 0
  %303 = vmatprep.subr.bf16.mxu0 0
  %304 = vmatpush2.bf16.msra.mxu0 0
  %305 = vmatprep.subr.bf16.mxu0 0
  %306 = vmatpush2.bf16.msra.mxu0 0
  %307 = vmatprep.subr.bf16.mxu0 0
  %308 = vmatpush2.bf16.msra.mxu0 0
  %309 = vmatprep.mubr.bf16.mxu0 0
  %310 = vmatmul.mubr.bf16.gmra.mxu0 %v91
  %v311 = vpop.f32.mrf.mxu0
  %v312 = vadd.f32 %v272, %v311
  %v313 = vpop.f32.mrf.mxu0
  %v314 = vpop.f32.mrf.mxu0
  %v315 = vpop.f32.mrf.mxu0
  %316 = vdwg.mxu0
  %v317 = vadd.f32 %v92, %v312
  %318 = vst [vmem:[%s2] sm:$0xff] %v317
  // Predicated region
  $region14: #{run.2} parent=0 // pred_check
    _
  $region15: #{run.2} parent=0 // pred_check_branch
    %320 = sbr.rel (0) target = $region17
  $region16: #{run.2} parent=0 // pred_region
    _
  $region17: #{run.2} parent=0 // pred_fallthru
    _
  // Predicated region
  $region18: #{run.2} parent=0 // pred_check
    _
  $region19: #{run.2} parent=0 // pred_check_branch
    %322 = sbr.rel (0) target = $region21
  $region20: #{run.2} parent=0 // pred_region
    _
  $region21: #{run.2} parent=0 // pred_fallthru
    _

// kernel: run.3
$region0: #{run.3}
  #allocation0 [shape = 'u32[]', space=smem, size = 0x4, offset = 0x4, fixed_abs, tag = 'smem constant byte address 0x4 - core index']
  #allocation1 [shape = 'u32[144,128]{1,0:T(1,128)}', space=vmem, size = 0x12000, scoped, tag = 'internal scratch']
  %s0 = inlined_call_operand.vmem [shape: f32[8,128], index: 0, kind: input, shape index: {}]
  %s1 = inlined_call_operand.vmem [shape: f32[8,1], index: 1, kind: input, shape index: {}]
  %s2 = inlined_call_operand.vmem [shape: f32[8,8], index: 2, kind: input, shape index: {}]
  %s3 = inlined_call_operand.hbm [shape: f32[1,1], index: 3, kind: output, shape index: {}]
  %s4 = sld [smem:[#allocation0]]
  $region22: #{run.3} parent=0
    _
  %s6 = ssub.s32 1, %s4
  %s7 = scalar_select 0, %s6, %s4
  $region1: #{run.3} parent=0
    #allocation2 [shape = 'u8[512]{0}', space=smem, size = 0x200, scoped, tag = 'output window, operand 0, single buffered']
    #allocation3 [shape = 's32[1]{0}', space=sflag, size = 0x4, scoped, tag = 'scoped memory for run.3']
    %8 = vsyncpa [#allocation3], 0
    // Predicated region
    $region2: #{run.3} parent=1 // pred_check
      _
    $region3: #{run.3} parent=1 // pred_check_branch
      %10 = sbr.rel (0) target = $region5
    $region4: #{run.3} parent=1 // pred_region
      _
    $region5: #{run.3} parent=1 // pred_fallthru
      _
    // Predicated region
    $region6: #{run.3} parent=1 // pred_check
      _
    $region7: #{run.3} parent=1 // pred_check_branch
      %12 = sbr.rel (0) target = $region9
    $region8: #{run.3} parent=1 // pred_region
      _
    $region9: #{run.3} parent=1 // pred_fallthru
      _
    // Predicated region
    $region10: #{run.3} parent=1 // pred_check
      _
    $region11: #{run.3} parent=1 // pred_check_branch
      %14 = sbr.rel (0) target = $region13
    $region12: #{run.3} parent=1 // pred_region
      _
    $region13: #{run.3} parent=1 // pred_fallthru
      _
    %v15 = vld [vmem:[%s1] sm:$0xff]
    %v16 = vld [vmem:[%s0] sm:$0xff]
    %v17 = vadd.f32 %v15, 1e-08
    %19 = vset.pattern.permute.xlu0 0
    %20 = vperm.xlu0 %19, %v17
    %v21 = vpop.permute.xlu0 %20
    %v23 = vrcp.pop %v21
    %v24 = vmul.f32 %v16, %v23
    %v25 = vmul.f32 %v24, %v24
    %26 = vadd.xlane.f32.xlu0 %v25
    %v27 = vpop.xlane.xlu0 %26
    %v28 = vmax.f32 %v27, 1e-24
    %v29 = vrsqrt.pop %v28
    %v30 = vmul.f32 %v24, %v29
    %v31 = vld [vmem:[%s2] sm:$0xff]
    %v32 = vlaneseq
    %v33 = vshrl.u32 %v32, 7
    %v34 = vlaneseq
    %v35 = vand.u32 %v34, 127
    %vm36 = vcmp.eq.s32.totalorder %v33, %v35
    %v37 = vsel %vm36, 1.0, %v31
    %vm38 = vcmask 64512
    %v39 = vsel %vm38, %v37, 0.0
    %40 = vadd.xlane.f32.xlu0 %v39
    %v41 = vpop.xlane.xlu0 %40
    %v42 = vmax.f32 %v41, 0.0
    %v43 = vadd.f32 %v42, 1e-08
    %v44 = vrsqrt.pop %v43
    %v45 = vmul.f32 %v30, %v30
    %46 = vadd.xlane.f32.xlu0 %v45
    %v47 = vpop.xlane.xlu0 %46
    %v48 = vrot.slane %v47, 4
    %v49 = vadd.f32 %v47, %v48
    %v50 = vrot.slane %v49, 2
    %v51 = vadd.f32 %v49, %v50
    %v52 = vrot.slane %v51, 1
    %v53 = vadd.f32 %v51, %v52
    %s54 = vtos %v53
    %v55 = vmul.f32 %v30, %v44
    %v57 = vsel %vm38, %v37, 0
    %59 = vmatprep.subr.mxu0 0.0
    %60 = vmatpush1.msra.mxu0 0.0
    %61 = vmatprep.subr.mxu0 0.0
    %62 = vmatpush1.msra.mxu0 0.0
    %63 = vmatprep.subr.mxu0 0.0
    %64 = vmatpush1.msra.mxu0 0.0
    %65 = vmatprep.subr.mxu0 0.0
    %66 = vmatpush1.msra.mxu0 0.0
    %67 = vmatprep.subr.mxu0 0.0
    %68 = vmatpush1.msra.mxu0 0.0
    %69 = vmatprep.subr.mxu0 0.0
    %70 = vmatpush1.msra.mxu0 0.0
    %71 = vmatprep.subr.mxu0 0.0
    %72 = vmatpush1.msra.mxu0 0.0
    %73 = vmatprep.subr.mxu0 0.0
    %74 = vmatpush1.msra.mxu0 0.0
    %75 = vmatprep.subr.mxu0 0.0
    %76 = vmatpush1.msra.mxu0 0.0
    %77 = vmatprep.subr.mxu0 0.0
    %78 = vmatpush1.msra.mxu0 0.0
    %79 = vmatprep.subr.mxu0 0.0
    %80 = vmatpush1.msra.mxu0 0.0
    %81 = vmatprep.subr.mxu0 0.0
    %82 = vmatpush1.msra.mxu0 0.0
    %83 = vmatprep.subr.mxu0 0.0
    %84 = vmatpush1.msra.mxu0 0.0
    %85 = vmatprep.subr.mxu0 0.0
    %86 = vmatpush1.msra.mxu0 0.0
    %87 = vmatprep.subr.mxu0 0.0
    %88 = vmatpush1.msra.mxu0 0.0
    %89 = vmatprep.subr.mxu0 0.0
    %90 = vmatpush1.msra.mxu0 %v55
    %91 = vmatprep.subr.mxu0 0.0
    %92 = vmatpush2.msra.mxu0 0.0
    %93 = vmatprep.subr.mxu0 0.0
    %94 = vmatpush2.msra.mxu0 0.0
    %95 = vmatprep.subr.mxu0 0.0
    %96 = vmatpush2.msra.mxu0 0.0
    %97 = vmatprep.subr.mxu0 0.0
    %98 = vmatpush2.msra.mxu0 0.0
    %99 = vmatprep.subr.mxu0 0.0
    %100 = vmatpush2.msra.mxu0 0.0
    %101 = vmatprep.subr.mxu0 0.0
    %102 = vmatpush2.msra.mxu0 0.0
    %103 = vmatprep.subr.mxu0 0.0
    %104 = vmatpush2.msra.mxu0 0.0
    %105 = vmatprep.subr.mxu0 0.0
    %106 = vmatpush2.msra.mxu0 0.0
    %107 = vmatprep.subr.mxu0 0.0
    %108 = vmatpush2.msra.mxu0 0.0
    %109 = vmatprep.subr.mxu0 0.0
    %110 = vmatpush2.msra.mxu0 0.0
    %111 = vmatprep.subr.mxu0 0.0
    %112 = vmatpush2.msra.mxu0 0.0
    %113 = vmatprep.subr.mxu0 0.0
    %114 = vmatpush2.msra.mxu0 0.0
    %115 = vmatprep.subr.mxu0 0.0
    %116 = vmatpush2.msra.mxu0 0.0
    %117 = vmatprep.subr.mxu0 0.0
    %118 = vmatpush2.msra.mxu0 0.0
    %119 = vmatprep.subr.mxu0 0.0
    %120 = vmatpush2.msra.mxu0 0.0
    %121 = vmatprep.subr.mxu0 0.0
    %122 = vmatpush2.msra.mxu0 0.0
    %123 = vmatprep.mubr.f32.mxu0 0.0
    %124 = vmatmul.mubr.f32.gmra.mxu0 %v57
    %v125 = vpop.f32.mrf.mxu0
    %v126 = vadd.f32 0.0, %v125
    %v127 = vpop.f32.mrf.mxu0
    %128 = vdwg.mxu0
    %v129 = vmul.f32 %v55, %v126
    %130 = vadd.xlane.f32.xlu0 %v129
    %v131 = vpop.xlane.xlu0 %130
    %v132 = vrot.slane %v131, 4
    %v133 = vadd.f32 %v131, %v132
    %v134 = vrot.slane %v133, 2
    %v135 = vadd.f32 %v133, %v134
    %v136 = vrot.slane %v135, 1
    %v137 = vadd.f32 %v135, %v136
    %s138 = vtos %v137
    %s139 = ssub.f32 %s54, %s138
    %v140 = vrcp.pop 6.0
    %s141 = vtos %v140
    %s142 = smul.f32 %s139, %s141
    %s143 = scalar_lea.smem [#allocation2], 0
    %144 = sst [smem:[%s143]] %s142
    // Predicated region
    $region14: #{run.3} parent=1 // pred_check
      _
    $region15: #{run.3} parent=1 // pred_check_branch
      %146 = sbr.rel (0) target = $region17
    $region16: #{run.3} parent=1 // pred_region
      %s148 = ssub.s32 16, 16
      %149 = vsyncadd [#allocation3], %s148
      %152 = dma.smem_to_hbm [#allocation2], 16, %s3, [#allocation3]
    $region17: #{run.3} parent=1 // pred_fallthru
      _
    // Predicated region
    $region18: #{run.3} parent=1 // pred_check
      _
    $region19: #{run.3} parent=1 // pred_check_branch
      %154 = sbr.rel (0) target = $region21
    $region20: #{run.3} parent=1 // pred_region
      %155 = dma.done [#allocation3], 16
    $region21: #{run.3} parent=1 // pred_fallthru
      _
    %156 = sfence
    %157 = vsyncpa [#allocation3], 1

</llo_original>
